<compile_context>
chip_gen: v7x
topology: tpu7x:2x2x1
jax: 0.10.0
libtpu: 0.0.40
codegen_flags: <defaults>
</compile_context>

<pallas_src>
import jax
import jax.numpy as jnp
from jax import lax
from jax.experimental import pallas as pl
from jax.experimental.pallas import tpu as pltpu


def embedder_kernel(idx_ref, proj_ref, out_ref):
    # idx_ref : (tm_rows, PACK) int32, already offset so slot j's index lives in
    #           block j of the block-diagonal proj (i.e. idx + j*Vp_pad).
    # proj_ref: (PACK*Vp_pad, PACK*D) f32, block-diagonal pre-projected table.
    # out_ref : (tm_rows, PACK*D) -- lane-dense (>=128 wide) output tile.
    idx = idx_ref[...]
    rows, pack = idx.shape
    kdim = proj_ref.shape[0]

    # One-hot selection built on the VPU (the kernel is store-bound, VPU/MXU
    # have huge slack): column c is hit iff some slot j has idx[t, j] == c.
    # Slots live in disjoint column ranges, so at most one hit per block.
    col = lax.broadcasted_iota(jnp.int32, (rows, kdim), 1)
    hit = col == idx[:, 0:1]
    for j in range(1, pack):  # pack is a small static constant (<= 4 here)
        hit = jnp.logical_or(hit, col == idx[:, j:j + 1])
    onehot = hit.astype(jnp.float32)

    # Single MXU matmul: (rows, PACK*Vp) @ (PACK*Vp, PACK*D) -> (rows, PACK*D).
    # The 0/1 one-hot makes this an exact row selection of proj.
    y = jnp.dot(onehot, proj_ref[...], preferred_element_type=jnp.float32)
    out_ref[...] = y.astype(out_ref.dtype)


def embedder_forward(src, cbfv_table, w_t, bias, *,
                     tm_tokens=1024, out_dtype=jnp.float32):
    """src: (B, T) int; cbfv_table: (V+1, F); w_t: (F, D); bias: (D,).

    tm_tokens: tokens per grid step (sweep 512-2048; kernel is HBM-write bound).
    out_dtype: set to jnp.bfloat16 if downstream consumes bf16 (halves the HBM
               write volume of a write-bound kernel).  Default f32 matches the
               reference module.
    """
    B, T = src.shape
    vp1, F = cbfv_table.shape
    D = w_t.shape[1]
    N = B * T

    # ---- hoisted Linear fold: proj[v] = cbfv[v] @ W^T + b (one tiny XLA op).
    # Pad table rows to a lane multiple (128): extra rows are zeros -> bias
    # after the fold, and are never selected by in-range indices.
    vp_pad = pl.cdiv(vp1, 128) * 128
    tab = jnp.pad(cbfv_table, ((0, vp_pad - vp1), (0, 0)))
    proj = jnp.dot(tab, w_t, precision=lax.Precision.HIGHEST) + bias[None, :]

    # ---- pack PACK tokens per output row so the store is >=128 lanes wide.
    if D < 128 and 128 % D == 0:
        pack = 128 // D
    else:
        pack = 1

    if pack > 1:
        # Block-diagonal proj: slot j's index block maps to output columns
        # [j*D, (j+1)*D), so one matmul emits the packed row directly
        # (no in-kernel relayout).
        proj_bd = jnp.kron(jnp.eye(pack, dtype=proj.dtype), proj)
    else:
        proj_bd = proj
    kdim = pack * vp_pad

    # ---- row tiling over packed tokens.
    n_rows = pl.cdiv(N, pack)                 # packed rows actually returned
    tm_rows = max(1, tm_tokens // pack)
    tm_rows = min(tm_rows, n_rows)
    if tm_rows < n_rows:                      # keep sublane-aligned tiles
        tm_rows = max(8, (tm_rows // 8) * 8)
    grid = (pl.cdiv(n_rows, tm_rows),)
    n_rows_pad = grid[0] * tm_rows

    # Token indices: pad with 0 (zeros cbfv row -> bias; discarded downstream),
    # pack PACK per row, then offset slot j into block j of proj_bd.
    # NOTE: the (tm_rows, PACK) index block is narrow in lanes; that's 4 B/token
    # of traffic vs ~128 B/token of output, so it's deliberately left simple.
    idx = src.reshape(N).astype(jnp.int32)
    idx = jnp.pad(idx, (0, n_rows_pad * pack - N)).reshape(n_rows_pad, pack)
    idx = idx + (jnp.arange(pack, dtype=jnp.int32) * vp_pad)[None, :]

    out = pl.pallas_call(
        embedder_kernel,
        # Exact (unpadded) packed output size: the ragged tail of the last grid
        # block (if any) is discarded by Pallas, so no out[:...] copy below.
        out_shape=jax.ShapeDtypeStruct((n_rows, pack * D), out_dtype),
        grid_spec=pltpu.PrefetchScalarGridSpec(
            num_scalar_prefetch=0,
            grid=grid,
            in_specs=[
                # per-tile packed token indices
                pl.BlockSpec((tm_rows, pack), lambda i: (i, 0)),
                # pre-projected (block-diagonal) table, fully VMEM-resident
                pl.BlockSpec((kdim, pack * D), lambda i: (0, 0)),
            ],
            out_specs=pl.BlockSpec((tm_rows, pack * D), lambda i: (i, 0)),
        ),
        compiler_params=pltpu.CompilerParams(
            # each packed-row tile is written exactly once -> independent;
            # lets v7x shard the row-tile axis across its 2 TensorCores.
            dimension_semantics=("parallel",)),
    )(idx, proj_bd)

    if n_rows * pack == N:
        # Row-major compatible reshape: packed row t holds tokens
        # t*pack .. t*pack+pack-1, each with D contiguous features -> free.
        return out.reshape(B, T, D)
    # Ragged N (N % pack != 0): need the trailing slice (only path with a copy).
    return out.reshape(n_rows * pack, D)[:N].reshape(B, T, D)


if __name__ == "__main__":
    key = jax.random.PRNGKey(0)
    k1, k2, k3, k4 = jax.random.split(key, 4)

    B, T = 2, 8         # batch, sequence length of element indices
    vocab = 16          # number of "elements" in the mat2vec table
    F = 64              # feat_size of the cbfv features
    D = 32              # d_model

    mat2vec = jax.random.normal(k1, (vocab, F), dtype=jnp.float32)
    cbfv_table = jnp.concatenate(
        [jnp.zeros((1, F), dtype=jnp.float32), mat2vec], axis=0)  # (vocab+1, F)

    # fc_mat2vec: nn.Linear(feat_size, d_model) -> y = x @ W.T + b
    W = jax.random.normal(k2, (D, F), dtype=jnp.float32) * 0.05
    b = jax.random.normal(k3, (D,), dtype=jnp.float32) * 0.05
    W_t = W.T                                                     # (F, D)

    src = jax.random.randint(k4, (B, T), 0, vocab + 1, dtype=jnp.int32)

    out = embedder_forward(src, cbfv_table, W_t, b)
    out = jax.block_until_ready(out)

    # plain-JAX reference: Embedding.from_pretrained lookup + Linear
    ref = jnp.matmul(cbfv_table[src], W.T,
                     precision=lax.Precision.HIGHEST) + b
    assert out.shape == (B, T, D)
    assert jnp.allclose(out, ref, atol=1e-4, rtol=1e-4), float(
        jnp.max(jnp.abs(out - ref)))

    print("KERNEL_OK")
</pallas_src>

<mosaic_0001>
module attributes {stable_mosaic.version = 11 : i64} {
  func.func @embedder_kernel(%arg0: i32, %arg1: memref<4x4xi32, #tpu.memory_space<vmem>>, %arg2: memref<512x128xf32, #tpu.memory_space<vmem>>, %arg3: memref<4x128xf32, #tpu.memory_space<vmem>>) attributes {dimension_semantics = [#tpu.dimension_semantics<parallel>], iteration_bounds = array<i64: 1>, scalar_prefetch = 0 : i64, scratch_operands = 0 : i64, tpu.core_type = #tpu.core_type<tc>, window_params = [{transform_indices = @transform_0, window_bounds = array<i64: 4, 4>}, {pipeline_mode = #tpu.pipeline_mode<synchronous>, transform_indices = @transform_1, window_bounds = array<i64: 512, 128>}, {transform_indices = @transform_2, window_bounds = array<i64: 4, 128>}]} {
    %c0 = arith.constant 0 : index
    %c0_0 = arith.constant 0 : index
    %0 = vector.load %arg1[%c0, %c0_0] : memref<4x4xi32, #tpu.memory_space<vmem>>, vector<4x4xi32>
    %1 = tpu.iota {dimensions = array<i32: 1>} : vector<4x512xi32>
    %2 = vector.extract_strided_slice %0 {offsets = [0, 0], sizes = [4, 1], strides = [1, 1]} : vector<4x4xi32> to vector<4x1xi32>
    %3 = vector.broadcast %2 : vector<4x1xi32> to vector<4x512xi32>
    %4 = arith.cmpi eq, %1, %3 : vector<4x512xi32>
    %5 = vector.extract_strided_slice %0 {offsets = [0, 1], sizes = [4, 1], strides = [1, 1]} : vector<4x4xi32> to vector<4x1xi32>
    %6 = vector.broadcast %5 : vector<4x1xi32> to vector<4x512xi32>
    %7 = arith.cmpi eq, %1, %6 : vector<4x512xi32>
    %8 = arith.ori %4, %7 : vector<4x512xi1>
    %9 = vector.extract_strided_slice %0 {offsets = [0, 2], sizes = [4, 1], strides = [1, 1]} : vector<4x4xi32> to vector<4x1xi32>
    %10 = vector.broadcast %9 : vector<4x1xi32> to vector<4x512xi32>
    %11 = arith.cmpi eq, %1, %10 : vector<4x512xi32>
    %12 = arith.ori %8, %11 : vector<4x512xi1>
    %13 = vector.extract_strided_slice %0 {offsets = [0, 3], sizes = [4, 1], strides = [1, 1]} : vector<4x4xi32> to vector<4x1xi32>
    %14 = vector.broadcast %13 : vector<4x1xi32> to vector<4x512xi32>
    %15 = arith.cmpi eq, %1, %14 : vector<4x512xi32>
    %16 = arith.ori %12, %15 : vector<4x512xi1>
    %17 = arith.extui %16 : vector<4x512xi1> to vector<4x512xi32>
    %18 = arith.sitofp %17 : vector<4x512xi32> to vector<4x512xf32>
    %c0_1 = arith.constant 0 : index
    %c0_2 = arith.constant 0 : index
    %19 = vector.load %arg2[%c0_1, %c0_2] : memref<512x128xf32, #tpu.memory_space<vmem>>, vector<512x128xf32>
    %cst = arith.constant dense<0.000000e+00> : vector<4x128xf32>
    %20 = tpu.matmul %18, %19, %cst {dimension_numbers = #tpu.dot_dimension_numbers<[1], [0], [0], [1], [0, 0, 1, 1], [], []>} : vector<4x512xf32>, vector<512x128xf32>, vector<4x128xf32> -> vector<4x128xf32>
    %c0_3 = arith.constant 0 : index
    %c0_4 = arith.constant 0 : index
    %21 = vector.load %arg3[%c0_3, %c0_4] : memref<4x128xf32, #tpu.memory_space<vmem>>, vector<4x128xf32>
    tpu.vector_store %arg3[%c0_3, %c0_4], %20 {strides = array<i32>} : memref<4x128xf32, #tpu.memory_space<vmem>>, vector<4x128xf32>,
    return
  }
  func.func @transform_0(%arg0: i32) -> (i32, i32) {
    %c0_i32 = arith.constant 0 : i32
    %c0_i32_0 = arith.constant 0 : i32
    return %arg0, %c0_i32 : i32, i32
  }
  func.func @transform_1(%arg0: i32) -> (i32, i32) {
    %c0_i32 = arith.constant 0 : i32
    %c0_i32_0 = arith.constant 0 : i32
    %c0_i32_1 = arith.constant 0 : i32
    return %c0_i32, %c0_i32_0 : i32, i32
  }
  func.func @transform_2(%arg0: i32) -> (i32, i32) {
    %c0_i32 = arith.constant 0 : i32
    %c0_i32_0 = arith.constant 0 : i32
    return %arg0, %c0_i32 : i32, i32
  }
}

</mosaic_0001>

<llo_original>
// kernel: tpu_custom_call.1
$region0: #{tpu_custom_call.1}
  #allocation0 [shape = 'u32[]', space=smem, size = 0x4, offset = 0x4, fixed_abs, tag = 'smem constant byte address 0x4 - core index']
  #allocation1 [shape = 'u32[144,128]{1,0:T(1,128)}', space=vmem, size = 0x12000, scoped, tag = 'internal scratch']
  %s0 = inlined_call_operand.hbm [shape: s32[4,4], index: 0, kind: input, shape index: {}]
  %s1 = inlined_call_operand.hbm [shape: f32[512,128], index: 1, kind: input, shape index: {}]
  %s2 = inlined_call_operand.hbm [shape: f32[4,128], index: 2, kind: output, shape index: {}]
  %s3 = sld [smem:[#allocation0]]
  $region26: #{tpu_custom_call.1} parent=0
    _
  %s5 = ssub.s32 1, %s3
  %s6 = scalar_select 0, %s5, %s3
  $region1: #{tpu_custom_call.1} parent=0
    #allocation2 [shape = 'u8[2048]{0}', space=vmem, size = 0x800, scoped, tag = 'input window, operand 0, single buffered']
    #allocation3 [shape = 's32[1]{0}', space=sflag, size = 0x4, scoped, tag = 'scoped memory for tpu_custom_call.1']
    #allocation4 [shape = 's32[1]{0}', space=sflag, size = 0x4, scoped, tag = 'scoped memory for tpu_custom_call.1']
    #allocation5 [shape = 'u8[262144]{0}', space=vmem, size = 0x40000, scoped, tag = 'input window, operand 1, single buffered']
    #allocation6 [shape = 's32[1]{0}', space=sflag, size = 0x4, scoped, tag = 'scoped memory for tpu_custom_call.1']
    #allocation7 [shape = 'u8[2048]{0}', space=vmem, size = 0x800, scoped, tag = 'output window, operand 0, single buffered']
    %7 = vsyncpa [#allocation3], 0
    %8 = vsyncpa [#allocation6], 0
    %9 = vsyncpa [#allocation4], 0
    // Predicated region
    $region2: #{tpu_custom_call.1} parent=1 // pred_check
      _
    $region3: #{tpu_custom_call.1} parent=1 // pred_check_branch
      %11 = sbr.rel (0) target = $region5
    $region4: #{tpu_custom_call.1} parent=1 // pred_region
      %s13 = ssub.s32 64, 64
      %14 = vsyncadd [#allocation3], %s13
      %s16 = sshll.u32 [#allocation2], 4
      %s17 = int_to_ptr.vmem [resolvable:$true] %s16
      %19 = dma.hbm_to_vmem [thread:$0]  %s0, 64, %s17, [#allocation3]
    $region5: #{tpu_custom_call.1} parent=1 // pred_fallthru
      _
    // Predicated region
    $region6: #{tpu_custom_call.1} parent=1 // pred_check
      _
    $region7: #{tpu_custom_call.1} parent=1 // pred_check_branch
      %21 = sbr.rel (0) target = $region9
    $region8: #{tpu_custom_call.1} parent=1 // pred_region
      %s23 = ssub.s32 8192, 8192
      %24 = vsyncadd [#allocation6], %s23
      %s25 = sshll.u32 [#allocation5], 4
      %s26 = int_to_ptr.vmem [resolvable:$true] %s25
      %31 = dma.hbm_to_vmem [thread:$0]  %s1, 8192, %s26, [#allocation6], 128, 128, 8
    $region9: #{tpu_custom_call.1} parent=1 // pred_fallthru
      _
    // Predicated region
    $region10: #{tpu_custom_call.1} parent=1 // pred_check
      _
    $region11: #{tpu_custom_call.1} parent=1 // pred_check_branch
      %33 = sbr.rel (0) target = $region13
    $region12: #{tpu_custom_call.1} parent=1 // pred_region
      %34 = dma.done [#allocation3], 64
    $region13: #{tpu_custom_call.1} parent=1 // pred_fallthru
      _
    // Predicated region
    $region14: #{tpu_custom_call.1} parent=1 // pred_check
      _
    $region15: #{tpu_custom_call.1} parent=1 // pred_check_branch
      %36 = sbr.rel (0) target = $region17
    $region16: #{tpu_custom_call.1} parent=1 // pred_region
      %37 = dma.done [#allocation6], 8192
    $region17: #{tpu_custom_call.1} parent=1 // pred_fallthru
      _
    %v38 = vld [vmem:[#allocation2] sm:$0xf]
    %v39 = vlaneseq
    %v40 = vand.u32 %v39, 127
    %v41 = vadd.s32 %v40, 128
    %v42 = vadd.s32 %v40, 256
    %v43 = vadd.s32 %v40, 384
    %44 = vset.pattern.permute.xlu0 0
    %45 = vperm.xlu0 %44, %v38
    %v46 = vpop.permute.xlu0 %45
    %vm47 = vcmp.eq.s32.totalorder %v40, %v46
    %vm48 = vcmp.eq.s32.totalorder %v41, %v46
    %vm49 = vcmp.eq.s32.totalorder %v42, %v46
    %vm50 = vcmp.eq.s32.totalorder %v43, %v46
    %51 = vset.pattern.permute.xlu0 1
    %52 = vperm.xlu0 %51, %v38
    %v53 = vpop.permute.xlu0 %52
    %vm54 = vcmp.eq.s32.totalorder %v40, %v53
    %vm55 = vcmp.eq.s32.totalorder %v41, %v53
    %vm56 = vcmp.eq.s32.totalorder %v42, %v53
    %vm57 = vcmp.eq.s32.totalorder %v43, %v53
    %vm58 = vmor %vm47, %vm54
    %vm59 = vmor %vm48, %vm55
    %vm60 = vmor %vm49, %vm56
    %vm61 = vmor %vm50, %vm57
    %62 = vset.pattern.permute.xlu0 2
    %63 = vperm.xlu0 %62, %v38
    %v64 = vpop.permute.xlu0 %63
    %vm65 = vcmp.eq.s32.totalorder %v40, %v64
    %vm66 = vcmp.eq.s32.totalorder %v41, %v64
    %vm67 = vcmp.eq.s32.totalorder %v42, %v64
    %vm68 = vcmp.eq.s32.totalorder %v43, %v64
    %vm69 = vmor %vm58, %vm65
    %vm70 = vmor %vm59, %vm66
    %vm71 = vmor %vm60, %vm67
    %vm72 = vmor %vm61, %vm68
    %73 = vset.pattern.permute.xlu0 3
    %74 = vperm.xlu0 %73, %v38
    %v75 = vpop.permute.xlu0 %74
    %vm76 = vcmp.eq.s32.totalorder %v40, %v75
    %vm77 = vcmp.eq.s32.totalorder %v41, %v75
    %vm78 = vcmp.eq.s32.totalorder %v42, %v75
    %vm79 = vcmp.eq.s32.totalorder %v43, %v75
    %vm80 = vmor %vm69, %vm76
    %vm81 = vmor %vm70, %vm77
    %vm82 = vmor %vm71, %vm78
    %vm83 = vmor %vm72, %vm79
    %v84 = vsel %vm80, 1, 0
    %v85 = vsel %vm81, 1, 0
    %v86 = vsel %vm82, 1, 0
    %v87 = vsel %vm83, 1, 0
    %v88 = vcvt.s32.f32 %v84
    %v89 = vcvt.s32.f32 %v85
    %v90 = vcvt.s32.f32 %v86
    %v91 = vcvt.s32.f32 %v87
    %v92 = vld [vmem:[#allocation5] sm:$0xff]
    %v93 = vld [vmem:[#allocation5 + $0x8] sm:$0xff]
    %v94 = vld [vmem:[#allocation5 + $0x10] sm:$0xff]
    %v95 = vld [vmem:[#allocation5 + $0x18] sm:$0xff]
    %v96 = vld [vmem:[#allocation5 + $0x20] sm:$0xff]
    %v97 = vld [vmem:[#allocation5 + $0x28] sm:$0xff]
    %v98 = vld [vmem:[#allocation5 + $0x30] sm:$0xff]
    %v99 = vld [vmem:[#allocation5 + $0x38] sm:$0xff]
    %v100 = vld [vmem:[#allocation5 + $0x40] sm:$0xff]
    %v101 = vld [vmem:[#allocation5 + $0x48] sm:$0xff]
    %v102 = vld [vmem:[#allocation5 + $0x50] sm:$0xff]
    %v103 = vld [vmem:[#allocation5 + $0x58] sm:$0xff]
    %v104 = vld [vmem:[#allocation5 + $0x60] sm:$0xff]
    %v105 = vld [vmem:[#allocation5 + $0x68] sm:$0xff]
    %v106 = vld [vmem:[#allocation5 + $0x70] sm:$0xff]
    %v107 = vld [vmem:[#allocation5 + $0x78] sm:$0xff]
    %v108 = vld [vmem:[#allocation5 + $0x80] sm:$0xff]
    %v109 = vld [vmem:[#allocation5 + $0x88] sm:$0xff]
    %v110 = vld [vmem:[#allocation5 + $0x90] sm:$0xff]
    %v111 = vld [vmem:[#allocation5 + $0x98] sm:$0xff]
    %v112 = vld [vmem:[#allocation5 + $0xa0] sm:$0xff]
    %v113 = vld [vmem:[#allocation5 + $0xa8] sm:$0xff]
    %v114 = vld [vmem:[#allocation5 + $0xb0] sm:$0xff]
    %v115 = vld [vmem:[#allocation5 + $0xb8] sm:$0xff]
    %v116 = vld [vmem:[#allocation5 + $0xc0] sm:$0xff]
    %v117 = vld [vmem:[#allocation5 + $0xc8] sm:$0xff]
    %v118 = vld [vmem:[#allocation5 + $0xd0] sm:$0xff]
    %v119 = vld [vmem:[#allocation5 + $0xd8] sm:$0xff]
    %v120 = vld [vmem:[#allocation5 + $0xe0] sm:$0xff]
    %v121 = vld [vmem:[#allocation5 + $0xe8] sm:$0xff]
    %v122 = vld [vmem:[#allocation5 + $0xf0] sm:$0xff]
    %v123 = vld [vmem:[#allocation5 + $0xf8] sm:$0xff]
    %v124 = vld [vmem:[#allocation5 + $0x100] sm:$0xff]
    %v125 = vld [vmem:[#allocation5 + $0x108] sm:$0xff]
    %v126 = vld [vmem:[#allocation5 + $0x110] sm:$0xff]
    %v127 = vld [vmem:[#allocation5 + $0x118] sm:$0xff]
    %v128 = vld [vmem:[#allocation5 + $0x120] sm:$0xff]
    %v129 = vld [vmem:[#allocation5 + $0x128] sm:$0xff]
    %v130 = vld [vmem:[#allocation5 + $0x130] sm:$0xff]
    %v131 = vld [vmem:[#allocation5 + $0x138] sm:$0xff]
    %v132 = vld [vmem:[#allocation5 + $0x140] sm:$0xff]
    %v133 = vld [vmem:[#allocation5 + $0x148] sm:$0xff]
    %v134 = vld [vmem:[#allocation5 + $0x150] sm:$0xff]
    %v135 = vld [vmem:[#allocation5 + $0x158] sm:$0xff]
    %v136 = vld [vmem:[#allocation5 + $0x160] sm:$0xff]
    %v137 = vld [vmem:[#allocation5 + $0x168] sm:$0xff]
    %v138 = vld [vmem:[#allocation5 + $0x170] sm:$0xff]
    %v139 = vld [vmem:[#allocation5 + $0x178] sm:$0xff]
    %v140 = vld [vmem:[#allocation5 + $0x180] sm:$0xff]
    %v141 = vld [vmem:[#allocation5 + $0x188] sm:$0xff]
    %v142 = vld [vmem:[#allocation5 + $0x190] sm:$0xff]
    %v143 = vld [vmem:[#allocation5 + $0x198] sm:$0xff]
    %v144 = vld [vmem:[#allocation5 + $0x1a0] sm:$0xff]
    %v145 = vld [vmem:[#allocation5 + $0x1a8] sm:$0xff]
    %v146 = vld [vmem:[#allocation5 + $0x1b0] sm:$0xff]
    %v147 = vld [vmem:[#allocation5 + $0x1b8] sm:$0xff]
    %v148 = vld [vmem:[#allocation5 + $0x1c0] sm:$0xff]
    %v149 = vld [vmem:[#allocation5 + $0x1c8] sm:$0xff]
    %v150 = vld [vmem:[#allocation5 + $0x1d0] sm:$0xff]
    %v151 = vld [vmem:[#allocation5 + $0x1d8] sm:$0xff]
    %v152 = vld [vmem:[#allocation5 + $0x1e0] sm:$0xff]
    %v153 = vld [vmem:[#allocation5 + $0x1e8] sm:$0xff]
    %v154 = vld [vmem:[#allocation5 + $0x1f0] sm:$0xff]
    %v155 = vld [vmem:[#allocation5 + $0x1f8] sm:$0xff]
    %156 = vmatprep.subr.mxu0 0.0
    %157 = vmatpush1.msra.mxu0 %v92
    %158 = vmatprep.subr.mxu0 0.0
    %159 = vmatpush1.msra.mxu0 %v93
    %160 = vmatprep.subr.mxu0 0.0
    %161 = vmatpush1.msra.mxu0 %v94
    %162 = vmatprep.subr.mxu0 0.0
    %163 = vmatpush1.msra.mxu0 %v95
    %164 = vmatprep.subr.mxu0 0.0
    %165 = vmatpush1.msra.mxu0 %v96
    %166 = vmatprep.subr.mxu0 0.0
    %167 = vmatpush1.msra.mxu0 %v97
    %168 = vmatprep.subr.mxu0 0.0
    %169 = vmatpush1.msra.mxu0 %v98
    %170 = vmatprep.subr.mxu0 0.0
    %171 = vmatpush1.msra.mxu0 %v99
    %172 = vmatprep.subr.mxu0 0.0
    %173 = vmatpush1.msra.mxu0 %v100
    %174 = vmatprep.subr.mxu0 0.0
    %175 = vmatpush1.msra.mxu0 %v101
    %176 = vmatprep.subr.mxu0 0.0
    %177 = vmatpush1.msra.mxu0 %v102
    %178 = vmatprep.subr.mxu0 0.0
    %179 = vmatpush1.msra.mxu0 %v103
    %180 = vmatprep.subr.mxu0 0.0
    %181 = vmatpush1.msra.mxu0 %v104
    %182 = vmatprep.subr.mxu0 0.0
    %183 = vmatpush1.msra.mxu0 %v105
    %184 = vmatprep.subr.mxu0 0.0
    %185 = vmatpush1.msra.mxu0 %v106
    %186 = vmatprep.subr.mxu0 0.0
    %187 = vmatpush1.msra.mxu0 %v107
    %188 = vmatprep.subr.mxu0 0.0
    %189 = vmatpush1.msra.mxu0 %v108
    %190 = vmatprep.subr.mxu0 0.0
    %191 = vmatpush1.msra.mxu0 %v109
    %192 = vmatprep.subr.mxu0 0.0
    %193 = vmatpush1.msra.mxu0 %v110
    %194 = vmatprep.subr.mxu0 0.0
    %195 = vmatpush1.msra.mxu0 %v111
    %196 = vmatprep.subr.mxu0 0.0
    %197 = vmatpush1.msra.mxu0 %v112
    %198 = vmatprep.subr.mxu0 0.0
    %199 = vmatpush1.msra.mxu0 %v113
    %200 = vmatprep.subr.mxu0 0.0
    %201 = vmatpush1.msra.mxu0 %v114
    %202 = vmatprep.subr.mxu0 0.0
    %203 = vmatpush1.msra.mxu0 %v115
    %204 = vmatprep.subr.mxu0 0.0
    %205 = vmatpush1.msra.mxu0 %v116
    %206 = vmatprep.subr.mxu0 0.0
    %207 = vmatpush1.msra.mxu0 %v117
    %208 = vmatprep.subr.mxu0 0.0
    %209 = vmatpush1.msra.mxu0 %v118
    %210 = vmatprep.subr.mxu0 0.0
    %211 = vmatpush1.msra.mxu0 %v119
    %212 = vmatprep.subr.mxu0 0.0
    %213 = vmatpush1.msra.mxu0 %v120
    %214 = vmatprep.subr.mxu0 0.0
    %215 = vmatpush1.msra.mxu0 %v121
    %216 = vmatprep.subr.mxu0 0.0
    %217 = vmatpush1.msra.mxu0 %v122
    %218 = vmatprep.subr.mxu0 0.0
    %219 = vmatpush1.msra.mxu0 %v123
    %220 = vmatprep.mubr.f32.mxu0 %v89
    %221 = vmatmul.mubr.f32.gmra.mrb[0].mxu0 %v88
    %v222 = vpop.f32.mrb[0].mxu0
    %v223 = vadd.f32 0.0, %v222
    %v224 = vpop.f32.mrb[0].mxu0
    %225 = vdwg.mxu0
    %226 = vmatprep.subr.mxu0 0.0
    %227 = vmatpush1.msra.mxu0 %v124
    %228 = vmatprep.subr.mxu0 0.0
    %229 = vmatpush1.msra.mxu0 %v125
    %230 = vmatprep.subr.mxu0 0.0
    %231 = vmatpush1.msra.mxu0 %v126
    %232 = vmatprep.subr.mxu0 0.0
    %233 = vmatpush1.msra.mxu0 %v127
    %234 = vmatprep.subr.mxu0 0.0
    %235 = vmatpush1.msra.mxu0 %v128
    %236 = vmatprep.subr.mxu0 0.0
    %237 = vmatpush1.msra.mxu0 %v129
    %238 = vmatprep.subr.mxu0 0.0
    %239 = vmatpush1.msra.mxu0 %v130
    %240 = vmatprep.subr.mxu0 0.0
    %241 = vmatpush1.msra.mxu0 %v131
    %242 = vmatprep.subr.mxu0 0.0
    %243 = vmatpush1.msra.mxu0 %v132
    %244 = vmatprep.subr.mxu0 0.0
    %245 = vmatpush1.msra.mxu0 %v133
    %246 = vmatprep.subr.mxu0 0.0
    %247 = vmatpush1.msra.mxu0 %v134
    %248 = vmatprep.subr.mxu0 0.0
    %249 = vmatpush1.msra.mxu0 %v135
    %250 = vmatprep.subr.mxu0 0.0
    %251 = vmatpush1.msra.mxu0 %v136
    %252 = vmatprep.subr.mxu0 0.0
    %253 = vmatpush1.msra.mxu0 %v137
    %254 = vmatprep.subr.mxu0 0.0
    %255 = vmatpush1.msra.mxu0 %v138
    %256 = vmatprep.subr.mxu0 0.0
    %257 = vmatpush1.msra.mxu0 %v139
    %258 = vmatprep.subr.mxu0 0.0
    %259 = vmatpush1.msra.mxu0 %v140
    %260 = vmatprep.subr.mxu0 0.0
    %261 = vmatpush1.msra.mxu0 %v141
    %262 = vmatprep.subr.mxu0 0.0
    %263 = vmatpush1.msra.mxu0 %v142
    %264 = vmatprep.subr.mxu0 0.0
    %265 = vmatpush1.msra.mxu0 %v143
    %266 = vmatprep.subr.mxu0 0.0
    %267 = vmatpush1.msra.mxu0 %v144
    %268 = vmatprep.subr.mxu0 0.0
    %269 = vmatpush1.msra.mxu0 %v145
    %270 = vmatprep.subr.mxu0 0.0
    %271 = vmatpush1.msra.mxu0 %v146
    %272 = vmatprep.subr.mxu0 0.0
    %273 = vmatpush1.msra.mxu0 %v147
    %274 = vmatprep.subr.mxu0 0.0
    %275 = vmatpush1.msra.mxu0 %v148
    %276 = vmatprep.subr.mxu0 0.0
    %277 = vmatpush1.msra.mxu0 %v149
    %278 = vmatprep.subr.mxu0 0.0
    %279 = vmatpush1.msra.mxu0 %v150
    %280 = vmatprep.subr.mxu0 0.0
    %281 = vmatpush1.msra.mxu0 %v151
    %282 = vmatprep.subr.mxu0 0.0
    %283 = vmatpush1.msra.mxu0 %v152
    %284 = vmatprep.subr.mxu0 0.0
    %285 = vmatpush1.msra.mxu0 %v153
    %286 = vmatprep.subr.mxu0 0.0
    %287 = vmatpush1.msra.mxu0 %v154
    %288 = vmatprep.subr.mxu0 0.0
    %289 = vmatpush1.msra.mxu0 %v155
    %290 = vmatprep.mubr.f32.mxu0 %v91
    %291 = vmatmul.mubr.f32.gmra.mrb[0].mxu0 %v90
    %v292 = vpop.f32.mrb[0].mxu0
    %v293 = vadd.f32 %v223, %v292
    %v294 = vpop.f32.mrb[0].mxu0
    %295 = vdwg.mxu0
    %296 = vst [vmem:[#allocation7] sm:$0xf] %v293
    // Predicated region
    $region18: #{tpu_custom_call.1} parent=1 // pred_check
      _
    $region19: #{tpu_custom_call.1} parent=1 // pred_check_branch
      %298 = sbr.rel (0) target = $region21
    $region20: #{tpu_custom_call.1} parent=1 // pred_region
      %s300 = ssub.s32 64, 64
      %301 = vsyncadd [#allocation4], %s300
      %s303 = sshll.u32 [#allocation7], 4
      %s304 = int_to_ptr.vmem [resolvable:$true] %s303
      %306 = dma.vmem_to_hbm [thread:$0]  %s304, 64, %s2, [#allocation4]
    $region21: #{tpu_custom_call.1} parent=1 // pred_fallthru
      _
    // Predicated region
    $region22: #{tpu_custom_call.1} parent=1 // pred_check
      _
    $region23: #{tpu_custom_call.1} parent=1 // pred_check_branch
      %308 = sbr.rel (0) target = $region25
    $region24: #{tpu_custom_call.1} parent=1 // pred_region
      %309 = dma.done [#allocation4], 64
    $region25: #{tpu_custom_call.1} parent=1 // pred_fallthru
      _
    %310 = vsyncpa [#allocation3], 1
    %311 = vsyncpa [#allocation6], 1
    %312 = vsyncpa [#allocation4], 1

</llo_original>
